<compile_context>
chip_gen: v6e
topology: v6e:2x2x1
jax: 0.10.0
libtpu: 0.0.40
codegen_flags: <defaults>
</compile_context>

<pallas_src>
import functools

import jax
import jax.numpy as jnp
from jax import lax
from jax.experimental import pallas as pl
from jax.experimental.pallas import tpu as pltpu


def _round_up(x, m):
    return ((x + m - 1) // m) * m


def _label_smoothing_kernel(pred_ref, tgt_ref, out_ref, acc_ref, *,
                            confidence, smooth_val, n_total, num_classes):
    # pred_ref: (C, TILE_N) logits (bf16 or f32), lane-dense over the batch
    # tgt_ref:  (1, TILE_N) int32 class indices
    # out_ref:  (1, 1) f32 final mean loss
    # acc_ref:  (1, 1) f32 running sum (VMEM scratch, persists across grid steps)
    i = pl.program_id(0)

    @pl.when(i == 0)
    def _init():
        acc_ref[...] = jnp.zeros_like(acc_ref)

    x = pred_ref[...].astype(jnp.float32)          # (C, TILE_N)
    tgt = tgt_ref[...]                             # (1, TILE_N) int32
    c, tile_n = x.shape

    # log-softmax pieces along the class axis (axis 0 = sublanes)
    x_max = jnp.max(x, axis=0, keepdims=True)                          # (1, TILE_N)
    shifted = x - x_max
    lse = jnp.log(jnp.sum(jnp.exp(shifted), axis=0, keepdims=True))    # (1, TILE_N)
    sum_shifted = jnp.sum(shifted, axis=0, keepdims=True)              # (1, TILE_N)

    # shifted value at the target class, per batch lane
    cls_ids = lax.broadcasted_iota(jnp.int32, (c, tile_n), 0)
    shifted_tgt = jnp.sum(jnp.where(cls_ids == tgt, shifted, 0.0),
                          axis=0, keepdims=True)                       # (1, TILE_N)

    # Folded smoothed cross entropy (true_dist never materialized):
    #   loss = -smooth*(sum_c shifted - C*lse) - (conf - smooth)*(shifted[tgt] - lse)
    loss = (-jnp.float32(smooth_val) * (sum_shifted - jnp.float32(num_classes) * lse)
            - jnp.float32(confidence - smooth_val) * (shifted_tgt - lse))

    # Mask out padded batch lanes of the last (partial) tile.
    lane = lax.broadcasted_iota(jnp.int32, (1, tile_n), 1)
    valid = (i * tile_n + lane) < n_total
    loss = jnp.where(valid, loss, 0.0)

    acc_ref[...] += jnp.sum(loss, axis=1, keepdims=True)

    @pl.when(i == pl.num_programs(0) - 1)
    def _finalize():
        out_ref[...] = acc_ref[...] * jnp.float32(1.0 / n_total)


def label_smoothing_loss(pred, target, *, classes=10, smoothing=0.0,
                         max_tile_n=8192):
    """pred: (N, C) logits (f32 or bf16); target: (N,) int labels. Returns scalar f32."""
    n, c = pred.shape
    assert c == classes
    confidence = 1.0 - smoothing
    smooth_val = smoothing / (classes - 1) if classes > 1 else 0.0

    # Batch tile: multiple of 128 (lane width); cap to keep VMEM small and portable
    # across v5e/v6e/v7x (a (16-sublane, TILE_N) bf16 buffer is tiny at 8K rows).
    tile_n = min(max_tile_n, _round_up(n, 128))
    n_pad = _round_up(n, tile_n)
    num_blocks = n_pad // tile_n

    # Lane-dense layout: classes on sublanes, batch on the 128-wide lane axis.
    # TODO(synk): have the producer emit logits already as (C, N) bf16 so this
    # transpose/pad does not cost an extra HBM pass in the wrapper.
    # TODO(synk): for large class counts, tile the class axis with an online
    # max/logsumexp instead of a single (C, TILE_N) block.
    pred_t = jnp.transpose(pred)                                     # (C, N)
    if n_pad != n:
        pred_t = jnp.pad(pred_t, ((0, 0), (0, n_pad - n)))
    tgt = jnp.pad(target.astype(jnp.int32), (0, n_pad - n)).reshape(1, n_pad)

    kernel = functools.partial(
        _label_smoothing_kernel,
        confidence=confidence, smooth_val=smooth_val,
        n_total=n, num_classes=c)

    out = pl.pallas_call(
        kernel,
        out_shape=jax.ShapeDtypeStruct((1, 1), jnp.float32),
        grid_spec=pltpu.PrefetchScalarGridSpec(
            num_scalar_prefetch=0,
            grid=(num_blocks,),
            in_specs=[
                pl.BlockSpec((c, tile_n), lambda i: (0, i)),   # logits, lane-dense
                pl.BlockSpec((1, tile_n), lambda i: (0, i)),   # targets, lane-dense
            ],
            out_specs=pl.BlockSpec((1, 1), lambda i: (0, 0)),  # resident accumulator out
            scratch_shapes=[pltpu.VMEM((1, 1), jnp.float32)],
        ),
        compiler_params=pltpu.CompilerParams(
            dimension_semantics=("arbitrary",),   # output block repeats across the grid
            vmem_limit_bytes=32 * 1024 * 1024),
    )(pred_t, tgt)
    return out[0, 0]


def _reference(pred, target, *, classes=10, smoothing=0.0):
    confidence = 1.0 - smoothing
    logp = jax.nn.log_softmax(pred.astype(jnp.float32), axis=-1)
    true_dist = jnp.full_like(logp, smoothing / (classes - 1))
    true_dist = true_dist.at[jnp.arange(pred.shape[0]), target].set(confidence)
    return jnp.mean(jnp.sum(-true_dist * logp, axis=-1))


if __name__ == "__main__":
    key = jax.random.PRNGKey(0)
    k1, k2 = jax.random.split(key)

    N, C = 8, 10               # batch of 8 samples, 10 CIFAR-10 classes
    smoothing = 0.1

    # bf16 logits: halves HBM traffic; kernel upcasts to f32 internally.
    pred = jax.random.normal(k1, (N, C), dtype=jnp.float32).astype(jnp.bfloat16)
    target = jax.random.randint(k2, (N,), 0, C, dtype=jnp.int32)

    loss = label_smoothing_loss(pred, target, classes=C, smoothing=smoothing)
    loss = jax.block_until_ready(loss)

    ref = _reference(pred, target, classes=C, smoothing=smoothing)
    assert jnp.allclose(loss, ref, atol=1e-5, rtol=1e-5), (loss, ref)

    print("KERNEL_OK")
</pallas_src>

<mosaic_0001>
module attributes {stable_mosaic.version = 11 : i64} {
  func.func @_label_smoothing_kernel(%arg0: i32, %arg1: memref<10x128xbf16, #tpu.memory_space<vmem>>, %arg2: memref<1x128xi32, #tpu.memory_space<vmem>>, %arg3: memref<1x1xf32, #tpu.memory_space<vmem>>, %arg4: memref<1x1xf32, #tpu.memory_space<vmem>>) attributes {dimension_semantics = [#tpu.dimension_semantics<arbitrary>], iteration_bounds = array<i64: 1>, scalar_prefetch = 0 : i64, scratch_operands = 1 : i64, tpu.core_type = #tpu.core_type<tc>, window_params = [{transform_indices = @transform_0, window_bounds = array<i64: 10, 128>}, {transform_indices = @transform_1, window_bounds = array<i64: 1, 128>}, {pipeline_mode = #tpu.pipeline_mode<synchronous>, transform_indices = @transform_2, window_bounds = array<i64: 1, 1>}]} {
    %c0_i32 = arith.constant 0 : i32
    %0 = arith.cmpi eq, %arg0, %c0_i32 : i32
    %1 = arith.extui %0 : i1 to i32
    %c0_i32_0 = arith.constant 0 : i32
    %2 = arith.cmpi ne, %1, %c0_i32_0 : i32
    scf.if %2 {
      %cst_20 = arith.constant 0.000000e+00 : f32
      %49 = vector.broadcast %cst_20 : f32 to vector<1x1xf32>
      %c0_21 = arith.constant 0 : index
      %c0_22 = arith.constant 0 : index
      %50 = vector.load %arg4[%c0_21, %c0_22] : memref<1x1xf32, #tpu.memory_space<vmem>>, vector<1x1xf32>
      tpu.vector_store %arg4[%c0_21, %c0_22], %49 {strides = array<i32>} : memref<1x1xf32, #tpu.memory_space<vmem>>, vector<1x1xf32>,
    } else {
    }
    %c0 = arith.constant 0 : index
    %c0_1 = arith.constant 0 : index
    %3 = vector.load %arg1[%c0, %c0_1] : memref<10x128xbf16, #tpu.memory_space<vmem>>, vector<10x128xbf16>
    %4 = arith.extf %3 : vector<10x128xbf16> to vector<10x128xf32>
    %c0_2 = arith.constant 0 : index
    %c0_3 = arith.constant 0 : index
    %5 = vector.load %arg2[%c0_2, %c0_3] : memref<1x128xi32, #tpu.memory_space<vmem>>, vector<1x128xi32>
    %cst = arith.constant dense<0xFF800000> : vector<128xf32>
    %6 = vector.multi_reduction <maximumf>, %4, %cst [0] : vector<10x128xf32> to vector<128xf32>
    %7 = vector.shape_cast %6 : vector<128xf32> to vector<1x128xf32>
    %8 = vector.broadcast %7 : vector<1x128xf32> to vector<10x128xf32>
    %9 = arith.subf %4, %8 : vector<10x128xf32>
    %10 = math.exp %9 : vector<10x128xf32>
    %cst_4 = arith.constant dense<0.000000e+00> : vector<128xf32>
    %11 = vector.multi_reduction <add>, %10, %cst_4 [0] : vector<10x128xf32> to vector<128xf32>
    %12 = vector.shape_cast %11 : vector<128xf32> to vector<1x128xf32>
    %13 = math.log %12 : vector<1x128xf32>
    %cst_5 = arith.constant dense<0.000000e+00> : vector<128xf32>
    %14 = vector.multi_reduction <add>, %9, %cst_5 [0] : vector<10x128xf32> to vector<128xf32>
    %15 = vector.shape_cast %14 : vector<128xf32> to vector<1x128xf32>
    %16 = tpu.iota {dimensions = array<i32: 0>} : vector<10x128xi32>
    %17 = vector.broadcast %5 : vector<1x128xi32> to vector<10x128xi32>
    %18 = arith.cmpi eq, %16, %17 : vector<10x128xi32>
    %cst_6 = arith.constant 0.000000e+00 : f32
    %19 = vector.broadcast %cst_6 : f32 to vector<10x128xf32>
    %20 = arith.select %18, %9, %19 : vector<10x128xi1>, vector<10x128xf32>
    %cst_7 = arith.constant dense<0.000000e+00> : vector<128xf32>
    %21 = vector.multi_reduction <add>, %20, %cst_7 [0] : vector<10x128xf32> to vector<128xf32>
    %22 = vector.shape_cast %21 : vector<128xf32> to vector<1x128xf32>
    %cst_8 = arith.constant 0.000000e+00 : f32
    %cst_9 = arith.constant 0.0111111114 : f32
    %23 = arith.subf %cst_8, %cst_9 : f32
    %cst_10 = arith.constant 1.000000e+01 : f32
    %24 = vector.broadcast %cst_10 : f32 to vector<1x128xf32>
    %25 = arith.mulf %24, %13 : vector<1x128xf32>
    %26 = arith.subf %15, %25 : vector<1x128xf32>
    %27 = vector.broadcast %23 : f32 to vector<1x128xf32>
    %28 = arith.mulf %27, %26 : vector<1x128xf32>
    %29 = arith.subf %22, %13 : vector<1x128xf32>
    %cst_11 = arith.constant 0.888888895 : f32
    %30 = vector.broadcast %cst_11 : f32 to vector<1x128xf32>
    %31 = arith.mulf %30, %29 : vector<1x128xf32>
    %32 = arith.subf %28, %31 : vector<1x128xf32>
    %33 = tpu.iota {dimensions = array<i32: 1>} : vector<1x128xi32>
    %c128_i32 = arith.constant 128 : i32
    %34 = arith.muli %arg0, %c128_i32 : i32
    %35 = vector.broadcast %34 : i32 to vector<1x128xi32>
    %36 = arith.addi %35, %33 : vector<1x128xi32>
    %c8_i32 = arith.constant 8 : i32
    %37 = vector.broadcast %c8_i32 : i32 to vector<1x128xi32>
    %38 = arith.cmpi slt, %36, %37 : vector<1x128xi32>
    %cst_12 = arith.constant 0.000000e+00 : f32
    %39 = vector.broadcast %cst_12 : f32 to vector<1x128xf32>
    %40 = arith.select %38, %32, %39 : vector<1x128xi1>, vector<1x128xf32>
    %c0_13 = arith.constant 0 : index
    %c0_14 = arith.constant 0 : index
    %41 = vector.load %arg4[%c0_13, %c0_14] : memref<1x1xf32, #tpu.memory_space<vmem>>, vector<1x1xf32>
    %cst_15 = arith.constant dense<0.000000e+00> : vector<1xf32>
    %42 = vector.multi_reduction <add>, %40, %cst_15 [1] : vector<1x128xf32> to vector<1xf32>
    %43 = vector.shape_cast %42 : vector<1xf32> to vector<1x1xf32>
    %44 = arith.addf %41, %43 : vector<1x1xf32>
    %c0_16 = arith.constant 0 : index
    %c0_17 = arith.constant 0 : index
    %45 = vector.load %arg4[%c0_16, %c0_17] : memref<1x1xf32, #tpu.memory_space<vmem>>, vector<1x1xf32>
    tpu.vector_store %arg4[%c0_16, %c0_17], %44 {strides = array<i32>} : memref<1x1xf32, #tpu.memory_space<vmem>>, vector<1x1xf32>,
    %c0_i32_18 = arith.constant 0 : i32
    %46 = arith.cmpi eq, %arg0, %c0_i32_18 : i32
    %47 = arith.extui %46 : i1 to i32
    %c0_i32_19 = arith.constant 0 : i32
    %48 = arith.cmpi ne, %47, %c0_i32_19 : i32
    scf.if %48 {
      %c0_20 = arith.constant 0 : index
      %c0_21 = arith.constant 0 : index
      %49 = vector.load %arg4[%c0_20, %c0_21] : memref<1x1xf32, #tpu.memory_space<vmem>>, vector<1x1xf32>
      %cst_22 = arith.constant 1.250000e-01 : f32
      %50 = vector.broadcast %cst_22 : f32 to vector<1x1xf32>
      %51 = arith.mulf %49, %50 : vector<1x1xf32>
      %c0_23 = arith.constant 0 : index
      %c0_24 = arith.constant 0 : index
      %52 = vector.load %arg3[%c0_23, %c0_24] : memref<1x1xf32, #tpu.memory_space<vmem>>, vector<1x1xf32>
      tpu.vector_store %arg3[%c0_23, %c0_24], %51 {strides = array<i32>} : memref<1x1xf32, #tpu.memory_space<vmem>>, vector<1x1xf32>,
    } else {
    }
    return
  }
  func.func @transform_0(%arg0: i32) -> (i32, i32) {
    %c0_i32 = arith.constant 0 : i32
    %c0_i32_0 = arith.constant 0 : i32
    return %c0_i32, %arg0 : i32, i32
  }
  func.func @transform_1(%arg0: i32) -> (i32, i32) {
    %c0_i32 = arith.constant 0 : i32
    %c0_i32_0 = arith.constant 0 : i32
    return %c0_i32, %arg0 : i32, i32
  }
  func.func @transform_2(%arg0: i32) -> (i32, i32) {
    %c0_i32 = arith.constant 0 : i32
    %c0_i32_0 = arith.constant 0 : i32
    %c0_i32_1 = arith.constant 0 : i32
    return %c0_i32, %c0_i32_0 : i32, i32
  }
}

</mosaic_0001>

<llo_original>
// kernel: tpu_custom_call.1
$region0: #{tpu_custom_call.1}
  #allocation0 [shape = 'u32[]', space=smem, size = 0x4, offset = 0x4, fixed_abs, tag = 'smem constant byte address 0x4 - core index']
  #allocation1 [shape = 'u32[144,128]{1,0:T(1,128)}', space=vmem, size = 0x12000, scoped, tag = 'internal scratch']
  #allocation2 [shape = 'f32[1,1]{1,0:T(1,128)}', space=vmem, size = 0x200, scoped, tag = 'scratch operand']
  %s0 = inlined_call_operand.hbm [shape: bf16[10,128], index: 0, kind: input, shape index: {}]
  %s1 = inlined_call_operand.vmem [shape: s32[1,128], index: 1, kind: input, shape index: {}]
  %s2 = inlined_call_operand.hbm [shape: f32[1,1], index: 2, kind: output, shape index: {}]
  %s3 = sld [smem:[#allocation0]]
  $region30: #{tpu_custom_call.1} parent=0
    _
  %s5 = ssub.s32 1, %s3
  %s6 = scalar_select 0, %s5, %s3
  $region1: #{tpu_custom_call.1} parent=0
    #allocation3 [shape = 'u8[4096]{0}', space=vmem, size = 0x1000, scoped, tag = 'input window, operand 0, single buffered']
    #allocation4 [shape = 's32[1]{0}', space=sflag, size = 0x4, scoped, tag = 'scoped memory for tpu_custom_call.1']
    #allocation5 [shape = 's32[1]{0}', space=sflag, size = 0x4, scoped, tag = 'scoped memory for tpu_custom_call.1']
    #allocation6 [shape = 'u8[512]{0}', space=vmem, size = 0x400, scoped, tag = 'output window, operand 0, single buffered']
    %7 = vsyncpa [#allocation4], 0
    %8 = vsyncpa [#allocation5], 0
    // Predicated region
    $region2: #{tpu_custom_call.1} parent=1 // pred_check
      _
    $region3: #{tpu_custom_call.1} parent=1 // pred_check_branch
      %10 = sbr.rel (0) target = $region5
    $region4: #{tpu_custom_call.1} parent=1 // pred_region
      %s12 = ssub.s32 128, 128
      %13 = vsyncadd [#allocation4], %s12
      %s14 = sshll.u32 [#allocation3], 4
      %s15 = int_to_ptr.vmem [resolvable:$true] %s14
      %20 = dma.hbm_to_vmem [thread:$0]  %s0, 128, %s15, [#allocation4], 64, 64, 4
    $region5: #{tpu_custom_call.1} parent=1 // pred_fallthru
      _
    // Predicated region
    $region6: #{tpu_custom_call.1} parent=1 // pred_check
      _
    $region7: #{tpu_custom_call.1} parent=1 // pred_check_branch
      %22 = sbr.rel (0) target = $region9
    $region8: #{tpu_custom_call.1} parent=1 // pred_region
      _
    $region9: #{tpu_custom_call.1} parent=1 // pred_fallthru
      _
    // Predicated region
    $region10: #{tpu_custom_call.1} parent=1 // pred_check
      _
    $region11: #{tpu_custom_call.1} parent=1 // pred_check_branch
      %24 = sbr.rel (0) target = $region13
    $region12: #{tpu_custom_call.1} parent=1 // pred_region
      %25 = dma.done [#allocation4], 128
    $region13: #{tpu_custom_call.1} parent=1 // pred_fallthru
      _
    %p26 = scmp.eq.s32.totalorder 0, 0
    // Predicated region
    $region14: #{tpu_custom_call.1} parent=1 // pred_check
      %p27 = pneg %p26
    $region15: #{tpu_custom_call.1} parent=1 // pred_check_branch
      %29 = sbr.rel (%p27) target = $region17
    $region16: #{tpu_custom_call.1} parent=1 // pred_region
      %vm30 = vcmask 0
      %31 = vst.msk [vmem:[#allocation2] sm:$0x1] %vm30, 0.0
    $region17: #{tpu_custom_call.1} parent=1 // pred_fallthru
      _
    %v32 = vld [vmem:[#allocation3] sm:$0xf]
    %v33 = vld [vmem:[#allocation3 + $0x4] sm:$0x1]
    %v34 = vunpack.c.l.bf16 %v32
    %v35 = vunpack.c.l.bf16 %v33
    %v36 = vld [vmem:[%s1] sm:$0x1]
    %vm37 = vcmask 1041408
    %v38 = vsel %vm37, %v35, -inf
    %v39 = vmax.f32 %v34, %v38
    %v40 = vrot.slane %v39, 4
    %v41 = vmax.f32 %v39, %v40
    %v42 = vrot.slane %v41, 2
    %v43 = vmax.f32 %v41, %v42
    %v44 = vrot.slane %v43, 1
    %v45 = vmax.f32 %v43, %v44
    %v46 = vsub.f32 %v34, %v45
    %v47 = vsub.f32 %v35, %v45
    %v48 = vmul.f32 %v46, 1.442695
    %v49 = vpow.pop %v48
    %v50 = vmul.f32 %v47, 1.442695
    %v51 = vpow.pop %v50
    %v52 = vsel %vm37, %v51, 0.0
    %v53 = vadd.f32 %v49, %v52
    %v54 = vrot.slane %v53, 4
    %v55 = vadd.f32 %v53, %v54
    %v56 = vrot.slane %v55, 2
    %v57 = vadd.f32 %v55, %v56
    %v58 = vrot.slane %v57, 1
    %v59 = vadd.f32 %v57, %v58
    %v60 = vlog2.pop %v59
    %v61 = vmul.f32 %v60, 0.6931472
    %v62 = vsel %vm37, %v47, 0.0
    %v63 = vadd.f32 %v46, %v62
    %v64 = vrot.slane %v63, 4
    %v65 = vadd.f32 %v63, %v64
    %v66 = vrot.slane %v65, 2
    %v67 = vadd.f32 %v65, %v66
    %v68 = vrot.slane %v67, 1
    %v69 = vadd.f32 %v67, %v68
    %v70 = vlaneseq
    %v71 = vshrl.u32 %v70, 7
    %v72 = vadd.s32 %v71, 8
    %v73 = vlaneseq
    %v74 = vshrl.u32 %v73, 7
    %v75 = vsub.s32 0, %v74
    %v76 = vrot.slane %v36, %v75
    %vm77 = vcmp.eq.s32.totalorder %v71, %v76
    %vm78 = vcmp.eq.s32.totalorder %v72, %v76
    %v79 = vsel %vm77, %v46, 0.0
    %v80 = vsel %vm78, %v47, 0.0
    %v81 = vsel %vm37, %v80, 0.0
    %v82 = vadd.f32 %v79, %v81
    %v83 = vrot.slane %v82, 4
    %v84 = vadd.f32 %v82, %v83
    %v85 = vrot.slane %v84, 2
    %v86 = vadd.f32 %v84, %v85
    %v87 = vrot.slane %v86, 1
    %v88 = vadd.f32 %v86, %v87
    %v89 = vmul.f32 %v61, 10.0
    %v90 = vsub.f32 %v69, %v89
    %v91 = vmul.f32 %v90, -0.011111111
    %v92 = vsub.f32 %v88, %v61
    %v93 = vmul.f32 %v92, 0.8888889
    %v94 = vsub.f32 %v91, %v93
    %v95 = vlaneseq
    %v96 = vand.u32 %v95, 127
    %s97 = smul.u32 0, 128
    %v98 = vstv %s97
    %v99 = vadd.s32 %v98, %v96
    %vm100 = vcmp.lt.s32.totalorder %v99, 8
    %v101 = vsel %vm100, %v94, 0.0
    %v102 = vld [vmem:[#allocation2] sm:$0x1]
    %103 = vadd.xlane.f32.xlu0 %v101
    %v104 = vpop.xlane.xlu0 %103
    %v105 = vadd.f32 %v102, %v104
    %vm106 = vcmask 0
    %107 = vst.msk [vmem:[#allocation2] sm:$0x1] %vm106, %v105
    // Predicated region
    $region18: #{tpu_custom_call.1} parent=1 // pred_check
      %p108 = pneg %p26
    $region19: #{tpu_custom_call.1} parent=1 // pred_check_branch
      %110 = sbr.rel (%p108) target = $region21
    $region20: #{tpu_custom_call.1} parent=1 // pred_region
      %v111 = vld [vmem:[#allocation2] sm:$0x1]
      %v112 = vmul.f32 %v111, 0.125
      %113 = vst.msk [vmem:[#allocation6] sm:$0x1] %vm106, %v112
    $region21: #{tpu_custom_call.1} parent=1 // pred_fallthru
      _
    // Predicated region
    $region22: #{tpu_custom_call.1} parent=1 // pred_check
      _
    $region23: #{tpu_custom_call.1} parent=1 // pred_check_branch
      %115 = sbr.rel (0) target = $region25
    $region24: #{tpu_custom_call.1} parent=1 // pred_region
      %s117 = ssub.s32 16, 16
      %118 = vsyncadd [#allocation5], %s117
      %s120 = sshll.u32 [#allocation6], 4
      %s121 = int_to_ptr.vmem [resolvable:$true] %s120
      %123 = dma.vmem_to_hbm [thread:$0]  %s121, 16, %s2, [#allocation5]
    $region25: #{tpu_custom_call.1} parent=1 // pred_fallthru
      _
    // Predicated region
    $region26: #{tpu_custom_call.1} parent=1 // pred_check
      _
    $region27: #{tpu_custom_call.1} parent=1 // pred_check_branch
      %125 = sbr.rel (0) target = $region29
    $region28: #{tpu_custom_call.1} parent=1 // pred_region
      %126 = dma.done [#allocation5], 16
    $region29: #{tpu_custom_call.1} parent=1 // pred_fallthru
      _
    %127 = vsyncpa [#allocation4], 1
    %128 = vsyncpa [#allocation5], 1

</llo_original>
